<compile_context>
chip_gen: v7x
topology: tpu7x:2x2x1
jax: 0.10.0
libtpu: 0.0.40
codegen_flags: <defaults>
</compile_context>

<pallas_src>
import jax
import jax.numpy as jnp
from jax.experimental import pallas as pl
from jax.experimental.pallas import tpu as pltpu

MAX_LENGTH = 5
LANE = 128
SUBLANE = 8
NEG_INF = jnp.float32(-1e30)


def _round_up(n, m):
    return ((n + m - 1) // m) * m


def decoder_kernel(tok_ref,
                   emb_ref, h0_ref, w_ref, b_ref, encca_ref,
                   logp_ref, hfin_ref, attw_ref,
                   h_sc):
    f32 = jnp.float32
    step = pl.program_id(0)
    H = h0_ref.shape[-1]
    MLp = attw_ref.shape[-1]
    OW = logp_ref.shape[-1]
    GW = _round_up(3 * H, LANE)
    MLr = encca_ref.shape[0]
    dot = lambda a, b: jnp.dot(a, b, preferred_element_type=f32)

    # Hidden state is carried across grid steps in VMEM scratch.
    @pl.when(step == 0)
    def _():
        h_sc[...] = h0_ref[...]

    # embedded = embedding(input): whole padded table is resident in VMEM
    # (one DMA for all T steps); row selected by an in-kernel dynamic slice.
    tok = tok_ref[step]
    embedded = emb_ref[pl.ds(tok, 1), :]                         # (1, H)
    # TODO(synk): nn.Dropout(p=0.05) is identity in eval mode; training-mode
    # dropout (RNG mask) is not implemented.

    hidden = h_sc[...]                                           # (1, H)

    # Fused matmul #1: one (1,2H) x (2H, MLp+4H) MXU pass produces
    #   [ attn_logits | gh = hidden@W_h + b_h | embedded@W_ce + b_c ]
    eh = jnp.concatenate([embedded, hidden], axis=1)             # (1, 2H)
    big = dot(eh, w_ref[0:2 * H, :]) + b_ref[0:1, :]             # (1, NW)
    attn_logits = big[:, 0:MLp]                                  # (1, MLp)
    gh = big[:, MLp:MLp + 3 * H]                                 # (1, 3H)
    e_wce = big[:, MLp + 3 * H:MLp + 4 * H]                      # (1, H)

    # attn_weights = softmax(attn(cat(emb, hid)), dim=1); padded lanes have
    # bias -1e30 -> exactly zero weight.
    m = jnp.max(attn_logits, axis=1, keepdims=True)
    e = jnp.exp(attn_logits - m)
    inv = pl.reciprocal(jnp.sum(e, axis=1, keepdims=True), approx=True)
    attn_w = e * inv
    attw_ref[...] = attn_w

    # attn_applied @ W_ca folded: enc_ca = encoder_outputs @ W_ca precomputed
    # per sequence; contraction runs over only round_up(ML, 8) rows.
    aa_ca = dot(attn_w[:, 0:MLr], encca_ref[...])                # (1, H)

    # output = relu(attn_combine(cat(embedded, attn_applied)))
    x = jnp.maximum(e_wce + aa_ca, 0.0)                          # (1, H)

    # Single-step GRU, fused gates (PyTorch (r, z, n) order).
    wio = w_ref[2 * H:3 * H, :]                                  # (H, NW)
    gi = dot(x, wio[:, 0:GW]) + b_ref[1:2, 0:GW]                 # (1, GW)
    r = jax.nn.sigmoid(gi[:, 0:H] + gh[:, 0:H])
    z = jax.nn.sigmoid(gi[:, H:2 * H] + gh[:, H:2 * H])
    n = jnp.tanh(gi[:, 2 * H:3 * H] + r * gh[:, 2 * H:3 * H])
    h_new = (1.0 - z) * n + z * hidden                           # (1, H)
    h_sc[...] = h_new
    hfin_ref[...] = h_new

    # output = log_softmax(out(output[0]), dim=1); padded vocab lanes carry a
    # -1e30 bias (and zero weights), so the real lanes are exact.
    logits = dot(h_new, wio[:, GW:GW + OW]) + b_ref[1:2, GW:GW + OW]
    m2 = jnp.max(logits, axis=1, keepdims=True)
    lse = jnp.log(jnp.sum(jnp.exp(logits - m2), axis=1, keepdims=True)) + m2
    logp_ref[...] = logits - lse


def _pack_params(p, ML):
    """Fuse all Linear/GRU weights into one lane-dense weight slab + one bias slab.

    w_slab (3H, NW): rows [0:2H]  = [ [w_ae; w_ah] | [0; W_h] | [w_ce; 0] ]
                     rows [2H:3H] = [ W_i | 0-pad | W_out | -pad ]
    b_slab (2, NW):  row 0 = [ b_a, -1e30 pad | b_h | b_c ]
                     row 1 = [ b_i | 0 pad | b_out, -1e30 pad ]
    """
    f32 = jnp.float32
    H = p["w_ce"].shape[0]
    O = p["emb"].shape[0]
    MLp = _round_up(ML, LANE)
    Op = _round_up(O, LANE)
    GW = _round_up(3 * H, LANE)
    NW = max(MLp + 4 * H, GW + Op)

    w_h = jnp.concatenate([p["w_hr"], p["w_hz"], p["w_hn"]], axis=1)   # (H, 3H)
    w_i = jnp.concatenate([p["w_ir"], p["w_iz"], p["w_in"]], axis=1)   # (H, 3H)
    b_h = jnp.concatenate([p["b_hr"], p["b_hz"], p["b_hn"]], axis=1)[0]
    b_i = jnp.concatenate([p["b_ir"], p["b_iz"], p["b_in"]], axis=1)[0]

    w1 = jnp.zeros((2 * H, NW), f32)
    w1 = w1.at[:H, :ML].set(p["w_ae"]).at[H:, :ML].set(p["w_ah"])
    w1 = w1.at[H:, MLp:MLp + 3 * H].set(w_h)
    w1 = w1.at[:H, MLp + 3 * H:MLp + 4 * H].set(p["w_ce"])

    wio = jnp.zeros((H, NW), f32)
    wio = wio.at[:, :3 * H].set(w_i)
    wio = wio.at[:, GW:GW + O].set(p["w_out"])

    w_slab = jnp.concatenate([w1, wio], axis=0)                        # (3H, NW)

    b1 = jnp.zeros((NW,), f32)
    b1 = b1.at[:MLp].set(NEG_INF).at[:ML].set(p["b_a"][0])
    b1 = b1.at[MLp:MLp + 3 * H].set(b_h)
    b1 = b1.at[MLp + 3 * H:MLp + 4 * H].set(p["b_c"][0])

    b2 = jnp.zeros((NW,), f32)
    b2 = b2.at[:3 * H].set(b_i)
    b2 = b2.at[GW:GW + Op].set(NEG_INF).at[GW:GW + O].set(p["b_out"][0])

    b_slab = jnp.stack([b1, b2], axis=0)                               # (2, NW)
    return w_slab, b_slab


@jax.jit
def attn_decoder_decode(tokens, hidden0, encoder_outputs, p):
    """Run T teacher-forced decoder steps in a single pallas_call.

    tokens: (T,) int32; hidden0: (1,1,H) f32; encoder_outputs: (ML,H) f32.
    Equivalent to calling Decoder.forward() T times, feeding the returned
    hidden back in and tokens[t] as the input token of step t.
    Returns (log_probs (T,O), final hidden (1,1,H), attn_weights (T,ML)).
    """
    T = tokens.shape[0]
    H = hidden0.shape[-1]
    O = p["emb"].shape[0]
    ML = encoder_outputs.shape[0]
    MLp = _round_up(ML, LANE)
    MLr = _round_up(ML, SUBLANE)
    Op = _round_up(O, LANE)
    Opad = _round_up(O, SUBLANE)

    h0 = hidden0.reshape(1, H).astype(jnp.float32)
    emb_pad = jnp.zeros((Opad, H), jnp.float32).at[:O, :].set(p["emb"])
    # encoder_outputs @ W_ca is constant across decode steps -> precompute.
    enc_ca = jnp.zeros((MLr, H), jnp.float32).at[:ML, :].set(
        encoder_outputs.astype(jnp.float32) @ p["w_ca"])
    w_slab, b_slab = _pack_params(p, ML)

    in_arrays = (emb_pad, h0, w_slab, b_slab, enc_ca)
    # All parameter inputs (all 2-D) use a constant index_map, so they are
    # DMA'd into VMEM once and stay resident across all T grid steps.
    in_specs = [pl.BlockSpec(a.shape, lambda i, tok_ref: (0, 0))
                for a in in_arrays]

    out_shape = (
        jax.ShapeDtypeStruct((T, 1, Op), jnp.float32),
        jax.ShapeDtypeStruct((1, H), jnp.float32),
        jax.ShapeDtypeStruct((T, 1, MLp), jnp.float32),
    )
    out_specs = [
        # Leading step axis is squeezed (None) so the kernel writes a
        # lane-dense (1, 128) block per step; hidden uses a constant block.
        pl.BlockSpec((None, 1, Op), lambda i, tok_ref: (i, 0, 0)),
        pl.BlockSpec((1, H), lambda i, tok_ref: (0, 0)),
        pl.BlockSpec((None, 1, MLp), lambda i, tok_ref: (i, 0, 0)),
    ]

    logp_pad, h_fin, attw_pad = pl.pallas_call(
        decoder_kernel,
        out_shape=out_shape,
        grid_spec=pltpu.PrefetchScalarGridSpec(
            num_scalar_prefetch=1,
            grid=(T,),
            in_specs=in_specs,
            out_specs=out_specs,
            scratch_shapes=[pltpu.VMEM((1, H), jnp.float32)],
        ),
        compiler_params=pltpu.CompilerParams(
            dimension_semantics=("arbitrary",)),
    )(tokens, *in_arrays)

    log_probs = logp_pad.reshape(T, Op)[:, :O]
    attn_w = attw_pad.reshape(T, MLp)[:, :ML]
    return log_probs, h_fin.reshape(1, 1, H), attn_w


def attn_decoder_forward(tok, hidden, encoder_outputs, p):
    """Single decoder step — same signature/semantics as Decoder.forward."""
    return attn_decoder_decode(tok.reshape(1).astype(jnp.int32),
                               hidden, encoder_outputs, p)


def init_params(key, hidden_size, output_size, max_length):
    H, O, ML = hidden_size, output_size, max_length
    ks = jax.random.split(key, 24)
    s = 0.1

    def rnd(k, shape):
        return (s * jax.random.normal(k, shape)).astype(jnp.float32)

    return {
        "emb":   rnd(ks[0], (O, H)),
        # attn: Linear(2H -> ML), split into the embedded / hidden halves
        "w_ae":  rnd(ks[1], (H, ML)), "w_ah": rnd(ks[2], (H, ML)),
        "b_a":   rnd(ks[3], (1, ML)),
        # attn_combine: Linear(2H -> H), split into embedded / attn_applied halves
        "w_ce":  rnd(ks[4], (H, H)), "w_ca": rnd(ks[5], (H, H)),
        "b_c":   rnd(ks[6], (1, H)),
        # GRU(H -> H), per-gate (input and hidden) weights, (in, out) layout
        "w_ir":  rnd(ks[7], (H, H)), "w_iz": rnd(ks[8], (H, H)),
        "w_in":  rnd(ks[9], (H, H)),
        "w_hr":  rnd(ks[10], (H, H)), "w_hz": rnd(ks[11], (H, H)),
        "w_hn":  rnd(ks[12], (H, H)),
        "b_ir":  rnd(ks[13], (1, H)), "b_iz": rnd(ks[14], (1, H)),
        "b_in":  rnd(ks[15], (1, H)),
        "b_hr":  rnd(ks[16], (1, H)), "b_hz": rnd(ks[17], (1, H)),
        "b_hn":  rnd(ks[18], (1, H)),
        # out: Linear(H -> O)
        "w_out": rnd(ks[19], (H, O)), "b_out": rnd(ks[20], (1, O)),
    }


def reference_forward(tok, hidden, enc, p):
    """Pure-JAX single-step reference (mirrors the PyTorch forward)."""
    emb = p["emb"][tok[0]][None, :]
    h = hidden.reshape(1, -1)
    logits = emb @ p["w_ae"] + h @ p["w_ah"] + p["b_a"]
    aw = jax.nn.softmax(logits, axis=1)
    aa = aw @ enc
    x = jax.nn.relu(emb @ p["w_ce"] + aa @ p["w_ca"] + p["b_c"])
    r = jax.nn.sigmoid(x @ p["w_ir"] + p["b_ir"] + h @ p["w_hr"] + p["b_hr"])
    z = jax.nn.sigmoid(x @ p["w_iz"] + p["b_iz"] + h @ p["w_hz"] + p["b_hz"])
    n = jnp.tanh(x @ p["w_in"] + p["b_in"] + r * (h @ p["w_hn"] + p["b_hn"]))
    hn = (1.0 - z) * n + z * h
    lp = jax.nn.log_softmax(hn @ p["w_out"] + p["b_out"], axis=1)
    return lp, hn.reshape(1, 1, -1), aw


if __name__ == "__main__":
    H, O, ML = 32, 40, MAX_LENGTH   # hidden_size, output_size (vocab), max_length
    T = MAX_LENGTH

    key = jax.random.PRNGKey(0)
    kp, kh, ke = jax.random.split(key, 3)
    params = init_params(kp, H, O, ML)

    tokens = jnp.array([3, 7, 1, 0, 12], dtype=jnp.int32)        # teacher-forced inputs
    hidden0 = (0.1 * jax.random.normal(kh, (1, 1, H))).astype(jnp.float32)
    encoder_outputs = (0.1 * jax.random.normal(ke, (ML, H))).astype(jnp.float32)

    # Fused T-step decode: one pallas_call, hidden carried in VMEM scratch.
    log_probs, h_fin, attn_w = attn_decoder_decode(
        tokens, hidden0, encoder_outputs, params)
    jax.block_until_ready((log_probs, h_fin, attn_w))

    # Reference: T sequential single-step forwards (teacher forcing).
    h_ref = hidden0
    ref_lps, ref_aws = [], []
    for t in range(T):
        lp_t, h_ref, aw_t = reference_forward(
            tokens[t:t + 1], h_ref, encoder_outputs, params)
        ref_lps.append(lp_t)
        ref_aws.append(aw_t)
    ref_lp = jnp.concatenate(ref_lps, axis=0)
    ref_aw = jnp.concatenate(ref_aws, axis=0)

    # atol 2e-3: attention softmax uses the approximate EUP reciprocal
    # (~2^-12 relative); everything else is exact f32.
    assert jnp.allclose(log_probs, ref_lp, atol=2e-3), "log_probs mismatch"
    assert jnp.allclose(h_fin, h_ref, atol=2e-3), "hidden mismatch"
    assert jnp.allclose(attn_w, ref_aw, atol=2e-3), "attn_weights mismatch"

    # Single-step call, matching the original module's forward() signature.
    lp1, h1, aw1 = attn_decoder_forward(tokens[:1], hidden0, encoder_outputs, params)
    jax.block_until_ready((lp1, h1, aw1))
    r_lp1, r_h1, r_aw1 = reference_forward(tokens[:1], hidden0, encoder_outputs, params)
    assert jnp.allclose(lp1, r_lp1, atol=2e-3), "single-step log_probs mismatch"
    assert jnp.allclose(h1, r_h1, atol=2e-3), "single-step hidden mismatch"
    assert jnp.allclose(aw1, r_aw1, atol=2e-3), "single-step attn mismatch"

    print("KERNEL_OK")
</pallas_src>

<mosaic_0001>
module attributes {stable_mosaic.version = 11 : i64} {
  func.func @decoder_kernel(%arg0: i32, %arg1: memref<5xi32, #tpu.memory_space<smem>>, %arg2: memref<40x32xf32, #tpu.memory_space<vmem>>, %arg3: memref<1x32xf32, #tpu.memory_space<vmem>>, %arg4: memref<96x256xf32, #tpu.memory_space<vmem>>, %arg5: memref<2x256xf32, #tpu.memory_space<vmem>>, %arg6: memref<8x32xf32, #tpu.memory_space<vmem>>, %arg7: memref<1x1x128xf32, #tpu.memory_space<vmem>>, %arg8: memref<1x32xf32, #tpu.memory_space<vmem>>, %arg9: memref<1x1x128xf32, #tpu.memory_space<vmem>>, %arg10: memref<1x32xf32, #tpu.memory_space<vmem>>) attributes {dimension_semantics = [#tpu.dimension_semantics<arbitrary>], iteration_bounds = array<i64: 5>, scalar_prefetch = 1 : i64, scratch_operands = 1 : i64, tpu.core_type = #tpu.core_type<tc>, window_params = [{pipeline_mode = #tpu.pipeline_mode<synchronous>, transform_indices = @transform_0, window_bounds = array<i64: 40, 32>}, {pipeline_mode = #tpu.pipeline_mode<synchronous>, transform_indices = @transform_1, window_bounds = array<i64: 1, 32>}, {pipeline_mode = #tpu.pipeline_mode<synchronous>, transform_indices = @transform_2, window_bounds = array<i64: 96, 256>}, {pipeline_mode = #tpu.pipeline_mode<synchronous>, transform_indices = @transform_3, window_bounds = array<i64: 2, 256>}, {pipeline_mode = #tpu.pipeline_mode<synchronous>, transform_indices = @transform_4, window_bounds = array<i64: 8, 32>}, {transform_indices = @transform_5, window_bounds = array<i64: 1, 1, 128>}, {pipeline_mode = #tpu.pipeline_mode<synchronous>, transform_indices = @transform_6, window_bounds = array<i64: 1, 32>}, {transform_indices = @transform_7, window_bounds = array<i64: 1, 1, 128>}]} {
    %c0_i32 = arith.constant 0 : i32
    %0 = arith.cmpi eq, %arg0, %c0_i32 : i32
    %1 = arith.extui %0 : i1 to i32
    %c0_i32_0 = arith.constant 0 : i32
    %2 = arith.cmpi ne, %1, %c0_i32_0 : i32
    scf.if %2 {
      %c0_33 = arith.constant 0 : index
      %c0_34 = arith.constant 0 : index
      %86 = vector.load %arg3[%c0_33, %c0_34] : memref<1x32xf32, #tpu.memory_space<vmem>>, vector<1x32xf32>
      %c0_35 = arith.constant 0 : index
      %c0_36 = arith.constant 0 : index
      %87 = vector.load %arg10[%c0_35, %c0_36] : memref<1x32xf32, #tpu.memory_space<vmem>>, vector<1x32xf32>
      tpu.vector_store %arg10[%c0_35, %c0_36], %86 {strides = array<i32>} : memref<1x32xf32, #tpu.memory_space<vmem>>, vector<1x32xf32>,
    } else {
    }
    %3 = arith.index_cast %arg0 : i32 to index
    %4 = memref.load %arg1[%3] : memref<5xi32, #tpu.memory_space<smem>>
    %5 = arith.index_cast %4 : i32 to index
    %c0 = arith.constant 0 : index
    %6 = vector.load %arg2[%5, %c0] : memref<40x32xf32, #tpu.memory_space<vmem>>, vector<1x32xf32>
    %c0_1 = arith.constant 0 : index
    %c0_2 = arith.constant 0 : index
    %7 = vector.load %arg10[%c0_1, %c0_2] : memref<1x32xf32, #tpu.memory_space<vmem>>, vector<1x32xf32>
    %8 = tpu.concatenate %6, %7 in 1 : vector<1x32xf32>, vector<1x32xf32> -> vector<1x64xf32>
    %c0_3 = arith.constant 0 : index
    %c0_4 = arith.constant 0 : index
    %9 = vector.load %arg4[%c0_3, %c0_4] : memref<96x256xf32, #tpu.memory_space<vmem>>, vector<64x256xf32>
    %cst = arith.constant dense<0.000000e+00> : vector<1x256xf32>
    %10 = tpu.matmul %8, %9, %cst {dimension_numbers = #tpu.dot_dimension_numbers<[1], [0], [0], [1], [0, 0, 1, 1], [], []>} : vector<1x64xf32>, vector<64x256xf32>, vector<1x256xf32> -> vector<1x256xf32>
    %c0_5 = arith.constant 0 : index
    %c0_6 = arith.constant 0 : index
    %11 = vector.load %arg5[%c0_5, %c0_6] : memref<2x256xf32, #tpu.memory_space<vmem>>, vector<1x256xf32>
    %12 = arith.addf %10, %11 : vector<1x256xf32>
    %13 = vector.extract_strided_slice %12 {offsets = [0, 0], sizes = [1, 128], strides = [1, 1]} : vector<1x256xf32> to vector<1x128xf32>
    %14 = vector.extract_strided_slice %12 {offsets = [0, 128], sizes = [1, 96], strides = [1, 1]} : vector<1x256xf32> to vector<1x96xf32>
    %15 = vector.extract_strided_slice %12 {offsets = [0, 224], sizes = [1, 32], strides = [1, 1]} : vector<1x256xf32> to vector<1x32xf32>
    %cst_7 = arith.constant dense<0xFF800000> : vector<1xf32>
    %16 = vector.multi_reduction <maximumf>, %13, %cst_7 [1] : vector<1x128xf32> to vector<1xf32>
    %17 = vector.shape_cast %16 : vector<1xf32> to vector<1x1xf32>
    %18 = vector.broadcast %17 : vector<1x1xf32> to vector<1x128xf32>
    %19 = arith.subf %13, %18 : vector<1x128xf32>
    %20 = math.exp %19 : vector<1x128xf32>
    %cst_8 = arith.constant dense<0.000000e+00> : vector<1xf32>
    %21 = vector.multi_reduction <add>, %20, %cst_8 [1] : vector<1x128xf32> to vector<1xf32>
    %22 = vector.shape_cast %21 : vector<1xf32> to vector<1x1xf32>
    %23 = tpu.reciprocal %22 {approx = true} : vector<1x1xf32> -> vector<1x1xf32>
    %24 = vector.broadcast %23 : vector<1x1xf32> to vector<1x128xf32>
    %25 = arith.mulf %20, %24 : vector<1x128xf32>
    %c0_9 = arith.constant 0 : index
    %c0_10 = arith.constant 0 : index
    %c0_11 = arith.constant 0 : index
    %26 = vector.load %arg9[%c0_9, %c0_10, %c0_11] : memref<1x1x128xf32, #tpu.memory_space<vmem>>, vector<1x1x128xf32>
    %27 = vector.shape_cast %26 : vector<1x1x128xf32> to vector<1x128xf32>
    %28 = vector.shape_cast %25 : vector<1x128xf32> to vector<1x1x128xf32>
    tpu.vector_store %arg9[%c0_9, %c0_10, %c0_11], %28 {strides = array<i32>} : memref<1x1x128xf32, #tpu.memory_space<vmem>>, vector<1x1x128xf32>,
    %29 = vector.extract_strided_slice %25 {offsets = [0, 0], sizes = [1, 8], strides = [1, 1]} : vector<1x128xf32> to vector<1x8xf32>
    %c0_12 = arith.constant 0 : index
    %c0_13 = arith.constant 0 : index
    %30 = vector.load %arg6[%c0_12, %c0_13] : memref<8x32xf32, #tpu.memory_space<vmem>>, vector<8x32xf32>
    %cst_14 = arith.constant dense<0.000000e+00> : vector<1x32xf32>
    %31 = tpu.matmul %29, %30, %cst_14 {dimension_numbers = #tpu.dot_dimension_numbers<[1], [0], [0], [1], [0, 0, 1, 1], [], []>} : vector<1x8xf32>, vector<8x32xf32>, vector<1x32xf32> -> vector<1x32xf32>
    %32 = arith.addf %15, %31 : vector<1x32xf32>
    %cst_15 = arith.constant 0.000000e+00 : f32
    %33 = vector.broadcast %cst_15 : f32 to vector<1x32xf32>
    %34 = arith.maximumf %32, %33 : vector<1x32xf32>
    %c64 = arith.constant 64 : index
    %c0_16 = arith.constant 0 : index
    %35 = vector.load %arg4[%c64, %c0_16] : memref<96x256xf32, #tpu.memory_space<vmem>>, vector<32x256xf32>
    %36 = vector.extract_strided_slice %35 {offsets = [0, 0], sizes = [32, 128], strides = [1, 1]} : vector<32x256xf32> to vector<32x128xf32>
    %cst_17 = arith.constant dense<0.000000e+00> : vector<1x128xf32>
    %37 = tpu.matmul %34, %36, %cst_17 {dimension_numbers = #tpu.dot_dimension_numbers<[1], [0], [0], [1], [0, 0, 1, 1], [], []>} : vector<1x32xf32>, vector<32x128xf32>, vector<1x128xf32> -> vector<1x128xf32>
    %c1 = arith.constant 1 : index
    %c0_18 = arith.constant 0 : index
    %38 = vector.load %arg5[%c1, %c0_18] : memref<2x256xf32, #tpu.memory_space<vmem>>, vector<1x128xf32>
    %39 = arith.addf %37, %38 : vector<1x128xf32>
    %40 = vector.extract_strided_slice %39 {offsets = [0, 0], sizes = [1, 32], strides = [1, 1]} : vector<1x128xf32> to vector<1x32xf32>
    %41 = vector.extract_strided_slice %14 {offsets = [0, 0], sizes = [1, 32], strides = [1, 1]} : vector<1x96xf32> to vector<1x32xf32>
    %42 = arith.addf %40, %41 : vector<1x32xf32>
    %43 = arith.negf %42 : vector<1x32xf32>
    %44 = math.exp %43 : vector<1x32xf32>
    %cst_19 = arith.constant 1.000000e+00 : f32
    %45 = vector.broadcast %cst_19 : f32 to vector<1x32xf32>
    %46 = arith.addf %45, %44 : vector<1x32xf32>
    %47 = arith.divf %45, %46 : vector<1x32xf32>
    %48 = vector.extract_strided_slice %39 {offsets = [0, 32], sizes = [1, 32], strides = [1, 1]} : vector<1x128xf32> to vector<1x32xf32>
    %49 = vector.extract_strided_slice %14 {offsets = [0, 32], sizes = [1, 32], strides = [1, 1]} : vector<1x96xf32> to vector<1x32xf32>
    %50 = arith.addf %48, %49 : vector<1x32xf32>
    %51 = arith.negf %50 : vector<1x32xf32>
    %52 = math.exp %51 : vector<1x32xf32>
    %cst_20 = arith.constant 1.000000e+00 : f32
    %53 = vector.broadcast %cst_20 : f32 to vector<1x32xf32>
    %54 = arith.addf %53, %52 : vector<1x32xf32>
    %55 = arith.divf %53, %54 : vector<1x32xf32>
    %56 = vector.extract_strided_slice %39 {offsets = [0, 64], sizes = [1, 32], strides = [1, 1]} : vector<1x128xf32> to vector<1x32xf32>
    %57 = vector.extract_strided_slice %14 {offsets = [0, 64], sizes = [1, 32], strides = [1, 1]} : vector<1x96xf32> to vector<1x32xf32>
    %58 = arith.mulf %47, %57 : vector<1x32xf32>
    %59 = arith.addf %56, %58 : vector<1x32xf32>
    %60 = math.tanh %59 : vector<1x32xf32>
    %cst_21 = arith.constant 1.000000e+00 : f32
    %61 = vector.broadcast %cst_21 : f32 to vector<1x32xf32>
    %62 = arith.subf %61, %55 : vector<1x32xf32>
    %63 = arith.mulf %62, %60 : vector<1x32xf32>
    %64 = arith.mulf %55, %7 : vector<1x32xf32>
    %65 = arith.addf %63, %64 : vector<1x32xf32>
    %c0_22 = arith.constant 0 : index
    %c0_23 = arith.constant 0 : index
    %66 = vector.load %arg10[%c0_22, %c0_23] : memref<1x32xf32, #tpu.memory_space<vmem>>, vector<1x32xf32>
    tpu.vector_store %arg10[%c0_22, %c0_23], %65 {strides = array<i32>} : memref<1x32xf32, #tpu.memory_space<vmem>>, vector<1x32xf32>,
    %c0_24 = arith.constant 0 : index
    %c0_25 = arith.constant 0 : index
    %67 = vector.load %arg8[%c0_24, %c0_25] : memref<1x32xf32, #tpu.memory_space<vmem>>, vector<1x32xf32>
    tpu.vector_store %arg8[%c0_24, %c0_25], %65 {strides = array<i32>} : memref<1x32xf32, #tpu.memory_space<vmem>>, vector<1x32xf32>,
    %68 = vector.extract_strided_slice %35 {offsets = [0, 128], sizes = [32, 128], strides = [1, 1]} : vector<32x256xf32> to vector<32x128xf32>
    %cst_26 = arith.constant dense<0.000000e+00> : vector<1x128xf32>
    %69 = tpu.matmul %65, %68, %cst_26 {dimension_numbers = #tpu.dot_dimension_numbers<[1], [0], [0], [1], [0, 0, 1, 1], [], []>} : vector<1x32xf32>, vector<32x128xf32>, vector<1x128xf32> -> vector<1x128xf32>
    %c1_27 = arith.constant 1 : index
    %c128 = arith.constant 128 : index
    %70 = vector.load %arg5[%c1_27, %c128] : memref<2x256xf32, #tpu.memory_space<vmem>>, vector<1x128xf32>
    %71 = arith.addf %69, %70 : vector<1x128xf32>
    %cst_28 = arith.constant dense<0xFF800000> : vector<1xf32>
    %72 = vector.multi_reduction <maximumf>, %71, %cst_28 [1] : vector<1x128xf32> to vector<1xf32>
    %73 = vector.shape_cast %72 : vector<1xf32> to vector<1x1xf32>
    %74 = vector.broadcast %73 : vector<1x1xf32> to vector<1x128xf32>
    %75 = arith.subf %71, %74 : vector<1x128xf32>
    %76 = math.exp %75 : vector<1x128xf32>
    %cst_29 = arith.constant dense<0.000000e+00> : vector<1xf32>
    %77 = vector.multi_reduction <add>, %76, %cst_29 [1] : vector<1x128xf32> to vector<1xf32>
    %78 = vector.shape_cast %77 : vector<1xf32> to vector<1x1xf32>
    %79 = math.log %78 : vector<1x1xf32>
    %80 = arith.addf %79, %73 : vector<1x1xf32>
    %81 = vector.broadcast %80 : vector<1x1xf32> to vector<1x128xf32>
    %82 = arith.subf %71, %81 : vector<1x128xf32>
    %c0_30 = arith.constant 0 : index
    %c0_31 = arith.constant 0 : index
    %c0_32 = arith.constant 0 : index
    %83 = vector.load %arg7[%c0_30, %c0_31, %c0_32] : memref<1x1x128xf32, #tpu.memory_space<vmem>>, vector<1x1x128xf32>
    %84 = vector.shape_cast %83 : vector<1x1x128xf32> to vector<1x128xf32>
    %85 = vector.shape_cast %82 : vector<1x128xf32> to vector<1x1x128xf32>
    tpu.vector_store %arg7[%c0_30, %c0_31, %c0_32], %85 {strides = array<i32>} : memref<1x1x128xf32, #tpu.memory_space<vmem>>, vector<1x1x128xf32>,
    return
  }
  func.func @transform_0(%arg0: i32, %arg1: memref<5xi32, #tpu.memory_space<smem>>) -> (i32, i32) {
    %c0_i32 = arith.constant 0 : i32
    %c0_i32_0 = arith.constant 0 : i32
    %c0_i32_1 = arith.constant 0 : i32
    return %c0_i32, %c0_i32_0 : i32, i32
  }
  func.func @transform_1(%arg0: i32, %arg1: memref<5xi32, #tpu.memory_space<smem>>) -> (i32, i32) {
    %c0_i32 = arith.constant 0 : i32
    %c0_i32_0 = arith.constant 0 : i32
    %c0_i32_1 = arith.constant 0 : i32
    return %c0_i32, %c0_i32_0 : i32, i32
  }
  func.func @transform_2(%arg0: i32, %arg1: memref<5xi32, #tpu.memory_space<smem>>) -> (i32, i32) {
    %c0_i32 = arith.constant 0 : i32
    %c0_i32_0 = arith.constant 0 : i32
    %c0_i32_1 = arith.constant 0 : i32
    return %c0_i32, %c0_i32_0 : i32, i32
  }
  func.func @transform_3(%arg0: i32, %arg1: memref<5xi32, #tpu.memory_space<smem>>) -> (i32, i32) {
    %c0_i32 = arith.constant 0 : i32
    %c0_i32_0 = arith.constant 0 : i32
    %c0_i32_1 = arith.constant 0 : i32
    return %c0_i32, %c0_i32_0 : i32, i32
  }
  func.func @transform_4(%arg0: i32, %arg1: memref<5xi32, #tpu.memory_space<smem>>) -> (i32, i32) {
    %c0_i32 = arith.constant 0 : i32
    %c0_i32_0 = arith.constant 0 : i32
    %c0_i32_1 = arith.constant 0 : i32
    return %c0_i32, %c0_i32_0 : i32, i32
  }
  func.func @transform_5(%arg0: i32, %arg1: memref<5xi32, #tpu.memory_space<smem>>) -> (i32, i32, i32) {
    %c0_i32 = arith.constant 0 : i32
    %c0_i32_0 = arith.constant 0 : i32
    %c0_i32_1 = arith.constant 0 : i32
    return %arg0, %c0_i32, %c0_i32_0 : i32, i32, i32
  }
  func.func @transform_6(%arg0: i32, %arg1: memref<5xi32, #tpu.memory_space<smem>>) -> (i32, i32) {
    %c0_i32 = arith.constant 0 : i32
    %c0_i32_0 = arith.constant 0 : i32
    %c0_i32_1 = arith.constant 0 : i32
    return %c0_i32, %c0_i32_0 : i32, i32
  }
  func.func @transform_7(%arg0: i32, %arg1: memref<5xi32, #tpu.memory_space<smem>>) -> (i32, i32, i32) {
    %c0_i32 = arith.constant 0 : i32
    %c0_i32_0 = arith.constant 0 : i32
    %c0_i32_1 = arith.constant 0 : i32
    return %arg0, %c0_i32, %c0_i32_0 : i32, i32, i32
  }
}

</mosaic_0001>

<llo_original>
// kernel: attn_decoder_decode.1
$region0: #{attn_decoder_decode.1}
  #allocation0 [shape = 'u32[]', space=smem, size = 0x4, offset = 0x4, fixed_abs, tag = 'smem constant byte address 0x4 - core index']
  #allocation1 [shape = 'u32[144,128]{1,0:T(1,128)}', space=vmem, size = 0x12000, scoped, tag = 'internal scratch']
  #allocation2 [shape = 'f32[1,32]{1,0:T(1,128)}', space=vmem, size = 0x200, scoped, tag = 'scratch operand']
  #allocation3 [shape = 's32[1]{0}', space=sflag, size = 0x4, scoped, tag = 'scoped memory for attn_decoder_decode.1']
  #allocation4 [shape = 'u8[512]{0}', space=smem, size = 0x200, scoped, tag = 'prefetched SMEM operand 0']
  %s0 = inlined_call_operand.vmem [shape: s32[5], index: 0, kind: input, shape index: {}]
  %s1 = inlined_call_operand.vmem [shape: f32[40,32], index: 1, kind: input, shape index: {}]
  %s2 = inlined_call_operand.vmem [shape: f32[1,32], index: 2, kind: input, shape index: {}]
  %s3 = inlined_call_operand.vmem [shape: f32[96,256], index: 3, kind: input, shape index: {}]
  %s4 = inlined_call_operand.vmem [shape: f32[2,256], index: 4, kind: input, shape index: {}]
  %s5 = inlined_call_operand.vmem [shape: f32[8,32], index: 5, kind: input, shape index: {}]
  %s6 = inlined_call_operand.vmem [shape: f32[5,1,128], index: 6, kind: output, shape index: {0}]
  %s7 = inlined_call_operand.hbm [shape: f32[1,32], index: 7, kind: output, shape index: {1}]
  %s8 = inlined_call_operand.vmem [shape: f32[5,1,128], index: 8, kind: output, shape index: {2}]
  %9 = xla_tuple %s6, %s7, %s8
  %s10 = sld [smem:[#allocation0]]
  $region73: #{attn_decoder_decode.1} parent=0
    _
  %s12 = ssub.s32 1, %s10
  %s13 = scalar_select 0, %s12, %s10
  %s14 = sshll.u32 %s0, 4
  %s15 = int_to_ptr.vmem [resolvable:$true] %s14
  %17 = dma.vmem_to_smem %s15, 16, [#allocation4], [#allocation3]
  %18 = dma.done [#allocation3], 16
  %19 = sfence
  $region1: #{attn_decoder_decode.1} parent=0
    #allocation5 [shape = 'u8[512]{0}', space=vmem, size = 0x400, scoped, tag = 'output window, operand 1, single buffered']
    #allocation6 [shape = 's32[2]{0}', space=sflag, size = 0x8, scoped, tag = 'scoped memory for attn_decoder_decode.1']
    %20 = vsyncpa [#allocation6], 0
    loop: start=0, step=1, limit=7
    $region2: #{attn_decoder_decode.1} parent=1 // loop_pre_header
      _
    $region3: #{attn_decoder_decode.1} parent=1 // loop_header
      %s22 = sphi 0, %s26
      %p23 = scmp.ge.s32.totalorder %s22, 7
      %s30 = sphi 0, %s30
      %s32 = sphi 0, %s30
      %s33 = sphi 0, %s32
      %s47 = sphi 0, %s33
      %s51 = sphi 0, %s51
      %s53 = sphi 0, %s51
      %s54 = sphi 0, %s53
      %s68 = sphi 0, %s54
      %s72 = sphi 0, %s72
      %s74 = sphi 0, %s72
      %s75 = sphi 0, %s74
      %s89 = sphi 0, %s75
      %s93 = sphi 0, %s93
      %s95 = sphi 0, %s93
      %s96 = sphi 0, %s95
      %s110 = sphi 0, %s96
      %s114 = sphi 0, %s114
      %s116 = sphi 0, %s114
      %s117 = sphi 0, %s116
      %s131 = sphi 0, %s117
      %s137 = sphi 0, %s139
      %s140 = sphi 0, %s137
      %s141 = sphi 0, %s140
      %s157 = sphi 0, %s141
      %s161 = sphi 0, %s161
      %s163 = sphi 0, %s161
      %s164 = sphi 0, %s163
      %s178 = sphi 0, %s164
      %s184 = sphi 0, %s186
      %s187 = sphi 0, %s184
      %s188 = sphi 0, %s187
      %s204 = sphi 0, %s188
    $region4: #{attn_decoder_decode.1} parent=1 // loop_header_branch
      %25 = sbr.rel (%p23) target = $region8
    $region5: #{attn_decoder_decode.1} parent=1 // loop_body
      %s27 = ssub.s32 %s22, 1
      %s28 = ssub.s32 %s22, 2
      %s29 = sadd.s32 %s22, 1
      %s31 = sadd.s32 %s30, 1
      %p34 = scmp.eq.s32.totalorder %s22, 4
      %p35 = scmp.ne.s32.totalorder %s30, %s32
      %p36 = scmp.eq.s32.totalorder %s22, 0
      %p37 = por %p35, %p36
      %p38 = scmp.ne.s32.totalorder %s30, %s32
      %p39 = scmp.eq.s32.totalorder %s27, 4
      %p40 = por %p38, %p39
      %p41 = scmp.ne.s32.totalorder %s32, %s33
      %p42 = scmp.eq.s32.totalorder %s27, 0
      %p43 = por %p41, %p42
      %p44 = scmp.ne.s32.totalorder %s32, %s33
      %p45 = scmp.eq.s32.totalorder %s28, 4
      %p46 = por %p44, %p45
      %p48 = scmp.ne.s32.totalorder %s33, %s47
      %p49 = scmp.eq.s32.totalorder %s28, 0
      %p50 = por %p48, %p49
      %s52 = sadd.s32 %s51, 1
      %p55 = scmp.eq.s32.totalorder %s22, 4
      %p56 = scmp.ne.s32.totalorder %s51, %s53
      %p57 = scmp.eq.s32.totalorder %s22, 0
      %p58 = por %p56, %p57
      %p59 = scmp.ne.s32.totalorder %s51, %s53
      %p60 = scmp.eq.s32.totalorder %s27, 4
      %p61 = por %p59, %p60
      %p62 = scmp.ne.s32.totalorder %s53, %s54
      %p63 = scmp.eq.s32.totalorder %s27, 0
      %p64 = por %p62, %p63
      %p65 = scmp.ne.s32.totalorder %s53, %s54
      %p66 = scmp.eq.s32.totalorder %s28, 4
      %p67 = por %p65, %p66
      %p69 = scmp.ne.s32.totalorder %s54, %s68
      %p70 = scmp.eq.s32.totalorder %s28, 0
      %p71 = por %p69, %p70
      %s73 = sadd.s32 %s72, 1
      %p76 = scmp.eq.s32.totalorder %s22, 4
      %p77 = scmp.ne.s32.totalorder %s72, %s74
      %p78 = scmp.eq.s32.totalorder %s22, 0
      %p79 = por %p77, %p78
      %p80 = scmp.ne.s32.totalorder %s72, %s74
      %p81 = scmp.eq.s32.totalorder %s27, 4
      %p82 = por %p80, %p81
      %p83 = scmp.ne.s32.totalorder %s74, %s75
      %p84 = scmp.eq.s32.totalorder %s27, 0
      %p85 = por %p83, %p84
      %p86 = scmp.ne.s32.totalorder %s74, %s75
      %p87 = scmp.eq.s32.totalorder %s28, 4
      %p88 = por %p86, %p87
      %p90 = scmp.ne.s32.totalorder %s75, %s89
      %p91 = scmp.eq.s32.totalorder %s28, 0
      %p92 = por %p90, %p91
      %s94 = sadd.s32 %s93, 1
      %p97 = scmp.eq.s32.totalorder %s22, 4
      %p98 = scmp.ne.s32.totalorder %s93, %s95
      %p99 = scmp.eq.s32.totalorder %s22, 0
      %p100 = por %p98, %p99
      %p101 = scmp.ne.s32.totalorder %s93, %s95
      %p102 = scmp.eq.s32.totalorder %s27, 4
      %p103 = por %p101, %p102
      %p104 = scmp.ne.s32.totalorder %s95, %s96
      %p105 = scmp.eq.s32.totalorder %s27, 0
      %p106 = por %p104, %p105
      %p107 = scmp.ne.s32.totalorder %s95, %s96
      %p108 = scmp.eq.s32.totalorder %s28, 4
      %p109 = por %p107, %p108
      %p111 = scmp.ne.s32.totalorder %s96, %s110
      %p112 = scmp.eq.s32.totalorder %s28, 0
      %p113 = por %p111, %p112
      %s115 = sadd.s32 %s114, 1
      %p118 = scmp.eq.s32.totalorder %s22, 4
      %p119 = scmp.ne.s32.totalorder %s114, %s116
      %p120 = scmp.eq.s32.totalorder %s22, 0
      %p121 = por %p119, %p120
      %p122 = scmp.ne.s32.totalorder %s114, %s116
      %p123 = scmp.eq.s32.totalorder %s27, 4
      %p124 = por %p122, %p123
      %p125 = scmp.ne.s32.totalorder %s116, %s117
      %p126 = scmp.eq.s32.totalorder %s27, 0
      %p127 = por %p125, %p126
      %p128 = scmp.ne.s32.totalorder %s116, %s117
      %p129 = scmp.eq.s32.totalorder %s28, 4
      %p130 = por %p128, %p129
      %p132 = scmp.ne.s32.totalorder %s117, %s131
      %p133 = scmp.eq.s32.totalorder %s28, 0
      %p134 = por %p132, %p133
      %s135 = ssub.s32 %s22, %s29
      %p136 = scmp.eq.s32.totalorder %s135, 0
      %s138 = sadd.s32 %s137, 1
      %s139 = scalar_select %p136, %s137, %s138
      %p142 = pneg %p136
      %p143 = scmp.eq.s32.totalorder %s22, 4
      %p144 = por %p142, %p143
      %p145 = scmp.ne.s32.totalorder %s137, %s140
      %p146 = scmp.eq.s32.totalorder %s22, 0
      %p147 = por %p145, %p146
      %p148 = scmp.ne.s32.totalorder %s137, %s140
      %p149 = scmp.eq.s32.totalorder %s27, 4
      %p150 = por %p148, %p149
      %p151 = scmp.ne.s32.totalorder %s140, %s141
      %p152 = scmp.eq.s32.totalorder %s27, 0
      %p153 = por %p151, %p152
      %p154 = scmp.ne.s32.totalorder %s140, %s141
      %p155 = scmp.eq.s32.totalorder %s28, 4
      %p156 = por %p154, %p155
      %p158 = scmp.ne.s32.totalorder %s141, %s157
      %p159 = scmp.eq.s32.totalorder %s28, 0
      %p160 = por %p158, %p159
      %s162 = sadd.s32 %s161, 1
      %p165 = scmp.eq.s32.totalorder %s22, 4
      %p166 = scmp.ne.s32.totalorder %s161, %s163
      %p167 = scmp.eq.s32.totalorder %s22, 0
      %p168 = por %p166, %p167
      %p169 = scmp.ne.s32.totalorder %s161, %s163
      %p170 = scmp.eq.s32.totalorder %s27, 4
      %p171 = por %p169, %p170
      %p172 = scmp.ne.s32.totalorder %s163, %s164
      %p173 = scmp.eq.s32.totalorder %s27, 0
      %p174 = por %p172, %p173
      %p175 = scmp.ne.s32.totalorder %s163, %s164
      %p176 = scmp.eq.s32.totalorder %s28, 4
      %p177 = por %p175, %p176
      %p179 = scmp.ne.s32.totalorder %s164, %s178
      %p180 = scmp.eq.s32.totalorder %s28, 0
      %p181 = por %p179, %p180
      %s182 = ssub.s32 %s22, %s29
      %p183 = scmp.eq.s32.totalorder %s182, 0
      %s185 = sadd.s32 %s184, 1
      %s186 = scalar_select %p183, %s184, %s185
      %p189 = pneg %p183
      %p190 = scmp.eq.s32.totalorder %s22, 4
      %p191 = por %p189, %p190
      %p192 = scmp.ne.s32.totalorder %s184, %s187
      %p193 = scmp.eq.s32.totalorder %s22, 0
      %p194 = por %p192, %p193
      %p195 = scmp.ne.s32.totalorder %s184, %s187
      %p196 = scmp.eq.s32.totalorder %s27, 4
      %p197 = por %p195, %p196
      %p198 = scmp.ne.s32.totalorder %s187, %s188
      %p199 = scmp.eq.s32.totalorder %s27, 0
      %p200 = por %p198, %p199
      %p201 = scmp.ne.s32.totalorder %s187, %s188
      %p202 = scmp.eq.s32.totalorder %s28, 4
      %p203 = por %p201, %p202
      %p205 = scmp.ne.s32.totalorder %s188, %s204
      %p206 = scmp.eq.s32.totalorder %s28, 0
      %p207 = por %p205, %p206
      %p208 = scmp.le.s32.totalorder 1, %s22
      %p209 = scmp.lt.s32.totalorder %s22, 6
      %p210 = pnand %p208, %p209
      %p211 = pneg %p210
      // Predicated region
      $region9: #{attn_decoder_decode.1} parent=5 // pred_check
        _
      $region10: #{attn_decoder_decode.1} parent=5 // pred_check_branch
        %213 = sbr.rel (%p210) target = $region12
      $region11: #{attn_decoder_decode.1} parent=5 // pred_region
        %s214 = ssub.s32 %s22, 1
        // Predicated region
        $region13: #{attn_decoder_decode.1} parent=11 // pred_check
          %p215 = pneg %p43
        $region14: #{attn_decoder_decode.1} parent=11 // pred_check_branch
          %217 = sbr.rel (%p215) target = $region16
        $region15: #{attn_decoder_decode.1} parent=11 // pred_region
          _
        $region16: #{attn_decoder_decode.1} parent=11 // pred_fallthru
          _
        // Predicated region
        $region17: #{attn_decoder_decode.1} parent=11 // pred_check
          %p218 = pneg %p64
        $region18: #{attn_decoder_decode.1} parent=11 // pred_check_branch
          %220 = sbr.rel (%p218) target = $region20
        $region19: #{attn_decoder_decode.1} parent=11 // pred_region
          _
        $region20: #{attn_decoder_decode.1} parent=11 // pred_fallthru
          _
        // Predicated region
        $region21: #{attn_decoder_decode.1} parent=11 // pred_check
          %p221 = pneg %p85
        $region22: #{attn_decoder_decode.1} parent=11 // pred_check_branch
          %223 = sbr.rel (%p221) target = $region24
        $region23: #{attn_decoder_decode.1} parent=11 // pred_region
          _
        $region24: #{attn_decoder_decode.1} parent=11 // pred_fallthru
          _
        // Predicated region
        $region25: #{attn_decoder_decode.1} parent=11 // pred_check
          %p224 = pneg %p106
        $region26: #{attn_decoder_decode.1} parent=11 // pred_check_branch
          %226 = sbr.rel (%p224) target = $region28
        $region27: #{attn_decoder_decode.1} parent=11 // pred_region
          _
        $region28: #{attn_decoder_decode.1} parent=11 // pred_fallthru
          _
        // Predicated region
        $region29: #{attn_decoder_decode.1} parent=11 // pred_check
          %p227 = pneg %p127
        $region30: #{attn_decoder_decode.1} parent=11 // pred_check_branch
          %229 = sbr.rel (%p227) target = $region32
        $region31: #{attn_decoder_decode.1} parent=11 // pred_region
          _
        $region32: #{attn_decoder_decode.1} parent=11 // pred_fallthru
          _
      $region12: #{attn_decoder_decode.1} parent=5 // pred_fallthru
        _
      %p230 = scmp.lt.s32.totalorder %s22, 5
      // Predicated region
      $region33: #{attn_decoder_decode.1} parent=5 // pred_check
        %p231 = pneg %p230
      $region34: #{attn_decoder_decode.1} parent=5 // pred_check_branch
        %233 = sbr.rel (%p231) target = $region36
      $region35: #{attn_decoder_decode.1} parent=5 // pred_region
        _
      $region36: #{attn_decoder_decode.1} parent=5 // pred_fallthru
        _
      %p234 = scmp.le.s32.totalorder 1, %s22
      %p235 = scmp.lt.s32.totalorder %s22, 6
      %p236 = pnand %p234, %p235
      %p237 = pneg %p236
      // Predicated region
      $region37: #{attn_decoder_decode.1} parent=5 // pred_check
        _
      $region38: #{attn_decoder_decode.1} parent=5 // pred_check_branch
        %239 = sbr.rel (%p236) target = $region40
      $region39: #{attn_decoder_decode.1} parent=5 // pred_region
        %s240 = ssub.s32 %s22, 1
        %p241 = pneg %p43
        %p242 = pneg %p40
        %p243 = pneg %p64
        %p244 = pneg %p61
        %p245 = pneg %p85
        %p246 = pneg %p82
        %p247 = pneg %p106
        %p248 = pneg %p103
        %p249 = pneg %p127
        %p250 = pneg %p124
        %p251 = pneg %p153
        %p252 = pneg %p150
        %p253 = scmp.lt.s32.totalorder %s27, 4
        %s254 = scalar_select %p253, %s27, 4
        %s255 = scalar_lea.vmem %s6, %s254
        %p256 = pneg %p174
        %p257 = pneg %p171
        %p258 = pneg %p200
        %p259 = pneg %p197
        %p260 = scmp.lt.s32.totalorder %s27, 4
        %s261 = scalar_select %p260, %s27, 4
        %s262 = scalar_lea.vmem %s8, %s261
        %p263 = scmp.lt.s32.totalorder %s27, 4
        %s264 = scalar_select %p263, %s27, 4
        %s265 = scalar_lea.vmem %s6, %s264
        %p266 = scmp.lt.s32.totalorder %s27, 4
        %s267 = scalar_select %p266, %s27, 4
        %s268 = scalar_lea.vmem %s8, %s267
        %p269 = scmp.eq.s32.totalorder %s27, 0
        // Predicated region
        $region41: #{attn_decoder_decode.1} parent=39 // pred_check
          %p270 = pneg %p269
        $region42: #{attn_decoder_decode.1} parent=39 // pred_check_branch
          %272 = sbr.rel (%p270) target = $region44
        $region43: #{attn_decoder_decode.1} parent=39 // pred_region
          %v273 = vld [vmem:[%s2] sm:$0x1]
          %vm274 = vcmask 253952
          %275 = vst.msk [vmem:[#allocation2] sm:$0x1] %vm274, %v273
        $region44: #{attn_decoder_decode.1} parent=39 // pred_fallthru
          _
        %s276 = sld [smem:[#allocation4 + %s27]]
        %s277 = scalar_lea.vmem %s1, %s276
        %v278 = vld [vmem:[%s277] sm:$0x1]
        %v279 = vld [vmem:[#allocation2] sm:$0x1]
        %v281 = vlaneseq
        %v282 = vshrl.u32 %v281, 7
        %v283 = vsub.s32 0, %v282
        %v284 = vrot.slane %v279, %v283
        %285 = vrot.lane.b32.xlu0 %v284, 32
        %v286 = vpop.permute.xlu0 %285
        %vm288 = vcmask 261120
        %v289 = vsel %vm288, %v278, %v286
        %v290 = vld [vmem:[%s3] sm:$0xff]
        %v291 = vld [vmem:[%s3 + $0x8] sm:$0xff]
        %v292 = vld [vmem:[%s3 + $0x10] sm:$0xff]
        %v293 = vld [vmem:[%s3 + $0x18] sm:$0xff]
        %v294 = vld [vmem:[%s3 + $0x20] sm:$0xff]
        %v295 = vld [vmem:[%s3 + $0x28] sm:$0xff]
        %v296 = vld [vmem:[%s3 + $0x30] sm:$0xff]
        %v297 = vld [vmem:[%s3 + $0x38] sm:$0xff]
        %v298 = vld [vmem:[%s3 + $0x40] sm:$0xff]
        %v299 = vld [vmem:[%s3 + $0x48] sm:$0xff]
        %v300 = vld [vmem:[%s3 + $0x50] sm:$0xff]
        %v301 = vld [vmem:[%s3 + $0x58] sm:$0xff]
        %v302 = vld [vmem:[%s3 + $0x60] sm:$0xff]
        %v303 = vld [vmem:[%s3 + $0x68] sm:$0xff]
        %v304 = vld [vmem:[%s3 + $0x70] sm:$0xff]
        %v305 = vld [vmem:[%s3 + $0x78] sm:$0xff]
        %v306 = vld [vmem:[%s4] ss:$2 sm:$0x3]
        %v308 = vlaneseq
        %v309 = vshrl.u32 %v308, 7
        %v310 = vsub.s32 0, %v309
        %v311 = vrot.slane %v306, %v310
        %v312 = vlaneseq
        %v313 = vshrl.u32 %v312, 7
        %v314 = vsub.s32 1, %v313
        %v315 = vrot.slane %v306, %v314
        %vm318 = vcmask 523264
        %v320 = vsel %vm318, %v289, 0
        %322 = vmatprep.subr.mxu0 %v291
        %323 = vmatpush1.msra.mxu0 %v290
        %324 = vmatprep.subr.mxu0 %v293
        %325 = vmatpush1.msra.mxu0 %v292
        %326 = vmatprep.subr.mxu0 %v295
        %327 = vmatpush1.msra.mxu0 %v294
        %328 = vmatprep.subr.mxu0 %v297
        %329 = vmatpush1.msra.mxu0 %v296
        %330 = vmatprep.subr.mxu0 %v299
        %331 = vmatpush1.msra.mxu0 %v298
        %332 = vmatprep.subr.mxu0 %v301
        %333 = vmatpush1.msra.mxu0 %v300
        %334 = vmatprep.subr.mxu0 %v303
        %335 = vmatpush1.msra.mxu0 %v302
        %336 = vmatprep.subr.mxu0 %v305
        %337 = vmatpush1.msra.mxu0 %v304
        %338 = vmatprep.subr.mxu0 0.0
        %339 = vmatpush1.msra.mxu0 0.0
        %340 = vmatprep.subr.mxu0 0.0
        %341 = vmatpush1.msra.mxu0 0.0
        %342 = vmatprep.subr.mxu0 0.0
        %343 = vmatpush1.msra.mxu0 0.0
        %344 = vmatprep.subr.mxu0 0.0
        %345 = vmatpush1.msra.mxu0 0.0
        %346 = vmatprep.subr.mxu0 0.0
        %347 = vmatpush1.msra.mxu0 0.0
        %348 = vmatprep.subr.mxu0 0.0
        %349 = vmatpush1.msra.mxu0 0.0
        %350 = vmatprep.subr.mxu0 0.0
        %351 = vmatpush1.msra.mxu0 0.0
        %352 = vmatprep.subr.mxu0 0.0
        %353 = vmatpush1.msra.mxu0 0.0
        %354 = vmatprep.subr.mxu0 0.0
        %355 = vmatpush1.msra.mxu0 0.0
        %356 = vmatprep.subr.mxu0 0.0
        %357 = vmatpush1.msra.mxu0 0.0
        %358 = vmatprep.subr.mxu0 0.0
        %359 = vmatpush1.msra.mxu0 0.0
        %360 = vmatprep.subr.mxu0 0.0
        %361 = vmatpush1.msra.mxu0 0.0
        %362 = vmatprep.subr.mxu0 0.0
        %363 = vmatpush1.msra.mxu0 0.0
        %364 = vmatprep.subr.mxu0 0.0
        %365 = vmatpush1.msra.mxu0 0.0
        %366 = vmatprep.subr.mxu0 0.0
        %367 = vmatpush1.msra.mxu0 0.0
        %368 = vmatprep.subr.mxu0 0.0
        %369 = vmatpush1.msra.mxu0 0.0
        %370 = vmatprep.subr.mxu0 0.0
        %371 = vmatpush1.msra.mxu0 0.0
        %372 = vmatprep.subr.mxu0 0.0
        %373 = vmatpush1.msra.mxu0 0.0
        %374 = vmatprep.subr.mxu0 0.0
        %375 = vmatpush1.msra.mxu0 0.0
        %376 = vmatprep.subr.mxu0 0.0
        %377 = vmatpush1.msra.mxu0 0.0
        %378 = vmatprep.subr.mxu0 0.0
        %379 = vmatpush1.msra.mxu0 0.0
        %380 = vmatprep.subr.mxu0 0.0
        %381 = vmatpush1.msra.mxu0 0.0
        %382 = vmatprep.subr.mxu0 0.0
        %383 = vmatpush1.msra.mxu0 0.0
        %384 = vmatprep.subr.mxu0 0.0
        %385 = vmatpush1.msra.mxu0 0.0
        %386 = vmatprep.mubr.f32.mxu0 0.0
        %387 = vmatmul.mubr.f32.gmra.mrb[0].mxu0 %v320
        %v388 = vpop.f32.mrb[0].mxu0
        %v389 = vadd.f32 %v311, %v388
        %v390 = vpop.f32.mrb[0].mxu0
        %v391 = vadd.f32 %v315, %v390
        %392 = vdwg.mxu0
        %vm393 = vcmask 1040384
        %v394 = vsel %vm393, %v389, -inf
        %395 = vmax.xlane.f32.xlu0 %v394
        %v396 = vpop.xlane.xlu0 %395
        %v397 = vsub.f32 %v389, %v396
        %v398 = vmul.f32 %v397, 1.442695
        %v399 = vpow.pop %v398
        %v400 = vsel %vm393, %v399, 0.0
        %401 = vadd.xlane.f32.xlu0 %v400
        %v402 = vpop.xlane.xlu0 %401
        %v403 = vrcp.pop %v402
        %v404 = vmul.f32 %v399, %v403
        %405 = vst [vmem:[%s268] sm:$0x1] %v404
        %v406 = vld [vmem:[%s5] sm:$0xff]
        %vm407 = vcmask 64512
        %v409 = vsel %vm407, %v404, 0
        %411 = vmatprep.subr.mxu0 0.0
        %412 = vmatpush1.msra.mxu0 %v406
        %413 = vmatprep.subr.mxu0 0.0
        %414 = vmatpush1.msra.mxu0 0.0
        %415 = vmatprep.subr.mxu0 0.0
        %416 = vmatpush1.msra.mxu0 0.0
        %417 = vmatprep.subr.mxu0 0.0
        %418 = vmatpush1.msra.mxu0 0.0
        %419 = vmatprep.subr.mxu0 0.0
        %420 = vmatpush1.msra.mxu0 0.0
        %421 = vmatprep.subr.mxu0 0.0
        %422 = vmatpush1.msra.mxu0 0.0
        %423 = vmatprep.subr.mxu0 0.0
        %424 = vmatpush1.msra.mxu0 0.0
        %425 = vmatprep.subr.mxu0 0.0
        %426 = vmatpush1.msra.mxu0 0.0
        %427 = vmatprep.subr.mxu0 0.0
        %428 = vmatpush1.msra.mxu0 0.0
        %429 = vmatprep.subr.mxu0 0.0
        %430 = vmatpush1.msra.mxu0 0.0
        %431 = vmatprep.subr.mxu0 0.0
        %432 = vmatpush1.msra.mxu0 0.0
        %433 = vmatprep.subr.mxu0 0.0
        %434 = vmatpush1.msra.mxu0 0.0
        %435 = vmatprep.subr.mxu0 0.0
        %436 = vmatpush1.msra.mxu0 0.0
        %437 = vmatprep.subr.mxu0 0.0
        %438 = vmatpush1.msra.mxu0 0.0
        %439 = vmatprep.subr.mxu0 0.0
        %440 = vmatpush1.msra.mxu0 0.0
        %441 = vmatprep.subr.mxu0 0.0
        %442 = vmatpush1.msra.mxu0 0.0
        %443 = vmatprep.subr.mxu0 0.0
        %444 = vmatpush1.msra.mxu0 0.0
        %445 = vmatprep.subr.mxu0 0.0
        %446 = vmatpush1.msra.mxu0 0.0
        %447 = vmatprep.subr.mxu0 0.0
        %448 = vmatpush1.msra.mxu0 0.0
        %449 = vmatprep.subr.mxu0 0.0
        %450 = vmatpush1.msra.mxu0 0.0
        %451 = vmatprep.subr.mxu0 0.0
        %452 = vmatpush1.msra.mxu0 0.0
        %453 = vmatprep.subr.mxu0 0.0
        %454 = vmatpush1.msra.mxu0 0.0
        %455 = vmatprep.subr.mxu0 0.0
        %456 = vmatpush1.msra.mxu0 0.0
        %457 = vmatprep.subr.mxu0 0.0
        %458 = vmatpush1.msra.mxu0 0.0
        %459 = vmatprep.subr.mxu0 0.0
        %460 = vmatpush1.msra.mxu0 0.0
        %461 = vmatprep.subr.mxu0 0.0
        %462 = vmatpush1.msra.mxu0 0.0
        %463 = vmatprep.subr.mxu0 0.0
        %464 = vmatpush1.msra.mxu0 0.0
        %465 = vmatprep.subr.mxu0 0.0
        %466 = vmatpush1.msra.mxu0 0.0
        %467 = vmatprep.subr.mxu0 0.0
        %468 = vmatpush1.msra.mxu0 0.0
        %469 = vmatprep.subr.mxu0 0.0
        %470 = vmatpush1.msra.mxu0 0.0
        %471 = vmatprep.subr.mxu0 0.0
        %472 = vmatpush1.msra.mxu0 0.0
        %473 = vmatprep.subr.mxu0 0.0
        %474 = vmatpush1.msra.mxu0 0.0
        %475 = vmatprep.mubr.f32.mxu0 0.0
        %476 = vmatmul.mubr.f32.gmra.mrb[0].mxu0 %v409
        %v477 = vpop.f32.mrb[0].mxu0
        %v478 = vadd.f32 0.0, %v477
        %v479 = vpop.f32.mrb[0].mxu0
        %480 = vdwg.mxu0
        %482 = vrot.lane.b32.xlu0 %v478, 96
        %v483 = vpop.permute.xlu0 %482
        %v485 = vadd.f32 %v391, %v483
        %v486 = vmax.f32 %v485, 0.0
        %v487 = vld [vmem:[%s3 + $0x80] sm:$0xff]
        %v488 = vld [vmem:[%s3 + $0x88] sm:$0xff]
        %v489 = vld [vmem:[%s3 + $0x90] sm:$0xff]
        %v490 = vld [vmem:[%s3 + $0x98] sm:$0xff]
        %v491 = vld [vmem:[%s3 + $0xa0] sm:$0xff]
        %v492 = vld [vmem:[%s3 + $0xa8] sm:$0xff]
        %v493 = vld [vmem:[%s3 + $0xb0] sm:$0xff]
        %v494 = vld [vmem:[%s3 + $0xb8] sm:$0xff]
        %v495 = vld [vmem:[%s4 + $0x1] sm:$0x1]
        %497 = vrot.lane.b32.xlu0 %v486, 32
        %v498 = vpop.permute.xlu0 %497
        %v499 = vsel %vm288, %v498, 0
        %501 = vmatprep.subr.mxu0 0.0
        %502 = vmatpush1.msra.mxu0 %v487
        %503 = vmatprep.subr.mxu0 0.0
        %504 = vmatpush1.msra.mxu0 %v489
        %505 = vmatprep.subr.mxu0 0.0
        %506 = vmatpush1.msra.mxu0 %v491
        %507 = vmatprep.subr.mxu0 0.0
        %508 = vmatpush1.msra.mxu0 %v493
        %509 = vmatprep.subr.mxu0 0.0
        %510 = vmatpush1.msra.mxu0 0.0
        %511 = vmatprep.subr.mxu0 0.0
        %512 = vmatpush1.msra.mxu0 0.0
        %513 = vmatprep.subr.mxu0 0.0
        %514 = vmatpush1.msra.mxu0 0.0
        %515 = vmatprep.subr.mxu0 0.0
        %516 = vmatpush1.msra.mxu0 0.0
        %517 = vmatprep.subr.mxu0 0.0
        %518 = vmatpush1.msra.mxu0 0.0
        %519 = vmatprep.subr.mxu0 0.0
        %520 = vmatpush1.msra.mxu0 0.0
        %521 = vmatprep.subr.mxu0 0.0
        %522 = vmatpush1.msra.mxu0 0.0
        %523 = vmatprep.subr.mxu0 0.0
        %524 = vmatpush1.msra.mxu0 0.0
        %525 = vmatprep.subr.mxu0 0.0
        %526 = vmatpush1.msra.mxu0 0.0
        %527 = vmatprep.subr.mxu0 0.0
        %528 = vmatpush1.msra.mxu0 0.0
        %529 = vmatprep.subr.mxu0 0.0
        %530 = vmatpush1.msra.mxu0 0.0
        %531 = vmatprep.subr.mxu0 0.0
        %532 = vmatpush1.msra.mxu0 0.0
        %533 = vmatprep.subr.mxu0 0.0
        %534 = vmatpush1.msra.mxu0 0.0
        %535 = vmatprep.subr.mxu0 0.0
        %536 = vmatpush1.msra.mxu0 0.0
        %537 = vmatprep.subr.mxu0 0.0
        %538 = vmatpush1.msra.mxu0 0.0
        %539 = vmatprep.subr.mxu0 0.0
        %540 = vmatpush1.msra.mxu0 0.0
        %541 = vmatprep.subr.mxu0 0.0
        %542 = vmatpush1.msra.mxu0 0.0
        %543 = vmatprep.subr.mxu0 0.0
        %544 = vmatpush1.msra.mxu0 0.0
        %545 = vmatprep.subr.mxu0 0.0
        %546 = vmatpush1.msra.mxu0 0.0
        %547 = vmatprep.subr.mxu0 0.0
        %548 = vmatpush1.msra.mxu0 0.0
        %549 = vmatprep.subr.mxu0 0.0
        %550 = vmatpush1.msra.mxu0 0.0
        %551 = vmatprep.subr.mxu0 0.0
        %552 = vmatpush1.msra.mxu0 0.0
        %553 = vmatprep.subr.mxu0 0.0
        %554 = vmatpush1.msra.mxu0 0.0
        %555 = vmatprep.subr.mxu0 0.0
        %556 = vmatpush1.msra.mxu0 0.0
        %557 = vmatprep.subr.mxu0 0.0
        %558 = vmatpush1.msra.mxu0 0.0
        %559 = vmatprep.subr.mxu0 0.0
        %560 = vmatpush1.msra.mxu0 0.0
        %561 = vmatprep.subr.mxu0 0.0
        %562 = vmatpush1.msra.mxu0 0.0
        %563 = vmatprep.subr.mxu0 0.0
        %564 = vmatpush1.msra.mxu0 0.0
        %565 = vmatprep.mubr.f32.mxu0 0.0
        %566 = vmatmul.mubr.f32.gmra.mrb[0].mxu0 %v499
        %v567 = vpop.f32.mrb[0].mxu0
        %v568 = vadd.f32 %v495, %v567
        %v569 = vpop.f32.mrb[0].mxu0
        %570 = vdwg.mxu0
        %v571 = vadd.f32 %v568, %v391
        %v572 = vxor.u32 %v571, 2147483648
        %v573 = vmul.f32 %v572, 1.442695
        %v574 = vpow.pop %v573
        %v575 = vadd.f32 %v574, 1.0
        %v576 = vrcp.pop %v575
        %v577 = vmul.f32 1.0, %v576
        %579 = vrot.lane.b32.xlu0 %v391, 64
        %v580 = vpop.permute.xlu0 %579
        %v582 = vmul.f32 %v577, %v580
        %584 = vrot.lane.b32.xlu0 %v582, 64
        %v585 = vpop.permute.xlu0 %584
        %v587 = vadd.f32 %v568, %v585
        %v588 = vtanh.pop %v587
        %v589 = vsub.f32 1.0, %v577
        %591 = vrot.lane.b32.xlu0 %v588, 96
        %v592 = vpop.permute.xlu0 %591
        %v594 = vmul.f32 %v589, %v592
        %v595 = vmul.f32 %v577, %v286
        %v596 = vadd.f32 %v594, %v595
        %598 = vrot.lane.b32.xlu0 %v596, 96
        %v599 = vpop.permute.xlu0 %598
        %vm601 = vcmask 253952
        %602 = vst.msk [vmem:[#allocation2] sm:$0x1] %vm601, %v599
        %603 = vst.msk [vmem:[#allocation5] sm:$0x1] %vm601, %v599
        %v604 = vld [vmem:[%s4 + $0x3] sm:$0x1]
        %v605 = vsel %vm288, %v599, 0
        %607 = vmatprep.subr.mxu0 0.0
        %608 = vmatpush1.msra.mxu0 %v488
        %609 = vmatprep.subr.mxu0 0.0
        %610 = vmatpush1.msra.mxu0 %v490
        %611 = vmatprep.subr.mxu0 0.0
        %612 = vmatpush1.msra.mxu0 %v492
        %613 = vmatprep.subr.mxu0 0.0
        %614 = vmatpush1.msra.mxu0 %v494
        %615 = vmatprep.subr.mxu0 0.0
        %616 = vmatpush1.msra.mxu0 0.0
        %617 = vmatprep.subr.mxu0 0.0
        %618 = vmatpush1.msra.mxu0 0.0
        %619 = vmatprep.subr.mxu0 0.0
        %620 = vmatpush1.msra.mxu0 0.0
        %621 = vmatprep.subr.mxu0 0.0
        %622 = vmatpush1.msra.mxu0 0.0
        %623 = vmatprep.subr.mxu0 0.0
        %624 = vmatpush1.msra.mxu0 0.0
        %625 = vmatprep.subr.mxu0 0.0
        %626 = vmatpush1.msra.mxu0 0.0
        %627 = vmatprep.subr.mxu0 0.0
        %628 = vmatpush1.msra.mxu0 0.0
        %629 = vmatprep.subr.mxu0 0.0
        %630 = vmatpush1.msra.mxu0 0.0
        %631 = vmatprep.subr.mxu0 0.0
        %632 = vmatpush1.msra.mxu0 0.0
        %633 = vmatprep.subr.mxu0 0.0
        %634 = vmatpush1.msra.mxu0 0.0
        %635 = vmatprep.subr.mxu0 0.0
        %636 = vmatpush1.msra.mxu0 0.0
        %637 = vmatprep.subr.mxu0 0.0
        %638 = vmatpush1.msra.mxu0 0.0
        %639 = vmatprep.subr.mxu0 0.0
        %640 = vmatpush1.msra.mxu0 0.0
        %641 = vmatprep.subr.mxu0 0.0
        %642 = vmatpush1.msra.mxu0 0.0
        %643 = vmatprep.subr.mxu0 0.0
        %644 = vmatpush1.msra.mxu0 0.0
        %645 = vmatprep.subr.mxu0 0.0
        %646 = vmatpush1.msra.mxu0 0.0
        %647 = vmatprep.subr.mxu0 0.0
        %648 = vmatpush1.msra.mxu0 0.0
        %649 = vmatprep.subr.mxu0 0.0
        %650 = vmatpush1.msra.mxu0 0.0
        %651 = vmatprep.subr.mxu0 0.0
        %652 = vmatpush1.msra.mxu0 0.0
        %653 = vmatprep.subr.mxu0 0.0
        %654 = vmatpush1.msra.mxu0 0.0
        %655 = vmatprep.subr.mxu0 0.0
        %656 = vmatpush1.msra.mxu0 0.0
        %657 = vmatprep.subr.mxu0 0.0
        %658 = vmatpush1.msra.mxu0 0.0
        %659 = vmatprep.subr.mxu0 0.0
        %660 = vmatpush1.msra.mxu0 0.0
        %661 = vmatprep.subr.mxu0 0.0
        %662 = vmatpush1.msra.mxu0 0.0
        %663 = vmatprep.subr.mxu0 0.0
        %664 = vmatpush1.msra.mxu0 0.0
        %665 = vmatprep.subr.mxu0 0.0
        %666 = vmatpush1.msra.mxu0 0.0
        %667 = vmatprep.subr.mxu0 0.0
        %668 = vmatpush1.msra.mxu0 0.0
        %669 = vmatprep.subr.mxu0 0.0
        %670 = vmatpush1.msra.mxu0 0.0
        %671 = vmatprep.mubr.f32.mxu0 0.0
        %672 = vmatmul.mubr.f32.gmra.mrb[0].mxu0 %v605
        %v673 = vpop.f32.mrb[0].mxu0
        %v674 = vadd.f32 %v604, %v673
        %v675 = vpop.f32.mrb[0].mxu0
        %676 = vdwg.mxu0
        %v677 = vsel %vm393, %v674, -inf
        %678 = vmax.xlane.f32.xlu0 %v677
        %v679 = vpop.xlane.xlu0 %678
        %v680 = vsub.f32 %v674, %v679
        %v681 = vmul.f32 %v680, 1.442695
        %v682 = vpow.pop %v681
        %v683 = vsel %vm393, %v682, 0.0
        %684 = vadd.xlane.f32.xlu0 %v683
        %v685 = vpop.xlane.xlu0 %684
        %v686 = vlog2.pop %v685
        %v687 = vmul.f32 %v686, 0.6931472
        %v688 = vadd.f32 %v687, %v679
        %v689 = vsub.f32 %v674, %v688
        %690 = vst [vmem:[%s265] sm:$0x1] %v689
        %p691 = scmp.lt.s32.totalorder %s27, 4
        %s692 = scalar_select %p691, %s27, 4
        %s693 = scalar_lea.vmem %s6, %s692
        %p694 = scmp.lt.s32.totalorder %s27, 4
        %s695 = scalar_select %p694, %s27, 4
        %s696 = scalar_lea.vmem %s8, %s695
        // Predicated region
        $region45: #{attn_decoder_decode.1} parent=39 // pred_check
          %p697 = pneg %p150
        $region46: #{attn_decoder_decode.1} parent=39 // pred_check_branch
          %699 = sbr.rel (%p697) target = $region48
        $region47: #{attn_decoder_decode.1} parent=39 // pred_region
          _
        $region48: #{attn_decoder_decode.1} parent=39 // pred_fallthru
          _
        // Predicated region
        $region49: #{attn_decoder_decode.1} parent=39 // pred_check
          %p700 = pneg %p171
        $region50: #{attn_decoder_decode.1} parent=39 // pred_check_branch
          %702 = sbr.rel (%p700) target = $region52
        $region51: #{attn_decoder_decode.1} parent=39 // pred_region
          %s704 = ssub.s32 16, 16
          %705 = vsyncadd [#allocation6], %s704
          %s707 = sshll.u32 [#allocation5], 4
          %s708 = int_to_ptr.vmem [resolvable:$true] %s707
          %710 = dma.vmem_to_hbm [thread:$0]  %s708, 16, %s7, [#allocation6]
        $region52: #{attn_decoder_decode.1} parent=39 // pred_fallthru
          _
        // Predicated region
        $region53: #{attn_decoder_decode.1} parent=39 // pred_check
          %p711 = pneg %p197
        $region54: #{attn_decoder_decode.1} parent=39 // pred_check_branch
          %713 = sbr.rel (%p711) target = $region56
        $region55: #{attn_decoder_decode.1} parent=39 // pred_region
          _
        $region56: #{attn_decoder_decode.1} parent=39 // pred_fallthru
          _
        // Predicated region
        $region57: #{attn_decoder_decode.1} parent=39 // pred_check
          %p714 = pneg %p171
        $region58: #{attn_decoder_decode.1} parent=39 // pred_check_branch
          %716 = sbr.rel (%p714) target = $region60
        $region59: #{attn_decoder_decode.1} parent=39 // pred_region
          %717 = dma.done [#allocation6], 16
        $region60: #{attn_decoder_decode.1} parent=39 // pred_fallthru
          _
      $region40: #{attn_decoder_decode.1} parent=5 // pred_fallthru
        _
      %p718 = scmp.le.s32.totalorder 2, %s22
      // Predicated region
      $region61: #{attn_decoder_decode.1} parent=5 // pred_check
        %p719 = pneg %p718
      $region62: #{attn_decoder_decode.1} parent=5 // pred_check_branch
        %721 = sbr.rel (%p719) target = $region64
      $region63: #{attn_decoder_decode.1} parent=5 // pred_region
        %s722 = ssub.s32 %s22, 2
        // Predicated region
        $region65: #{attn_decoder_decode.1} parent=63 // pred_check
          %p723 = pneg %p156
        $region66: #{attn_decoder_decode.1} parent=63 // pred_check_branch
          %725 = sbr.rel (%p723) target = $region68
        $region67: #{attn_decoder_decode.1} parent=63 // pred_region
          %p726 = scmp.lt.s32.totalorder %s28, 4
          %s727 = scalar_select %p726, %s28, 4
          %s728 = scalar_lea.vmem %s6, %s727
        $region68: #{attn_decoder_decode.1} parent=63 // pred_fallthru
          _
        // Predicated region
        $region69: #{attn_decoder_decode.1} parent=63 // pred_check
          %p729 = pneg %p203
        $region70: #{attn_decoder_decode.1} parent=63 // pred_check_branch
          %731 = sbr.rel (%p729) target = $region72
        $region71: #{attn_decoder_decode.1} parent=63 // pred_region
          %p732 = scmp.lt.s32.totalorder %s28, 4
          %s733 = scalar_select %p732, %s28, 4
          %s734 = scalar_lea.vmem %s8, %s733
        $region72: #{attn_decoder_decode.1} parent=63 // pred_fallthru
          _
      $region64: #{attn_decoder_decode.1} parent=5 // pred_fallthru
        _
    $region6: #{attn_decoder_decode.1} parent=1 // loop_footer
      %s26 = sadd.s32 1, %s22
    $region7: #{attn_decoder_decode.1} parent=1 // loop_footer_branch
      %21 = sbr.rel target = $region3
    $region8: #{attn_decoder_decode.1} parent=1 // loop_exit
      _
    %735 = vsyncpa [#allocation6], 1
    %s736 = scalar_lea.sflag [#allocation6], 1
    %737 = vsyncpa %s736, 1

</llo_original>
